<compile_context>
chip_gen: v5e
topology: v5e:2x2
jax: 0.10.0
libtpu: 0.0.40
codegen_flags: <defaults>
</compile_context>

<pallas_src>
import functools

import jax
import jax.numpy as jnp
import numpy as np
from jax.experimental import pallas as pl
from jax.experimental.pallas import tpu as pltpu


def _input_graph_embedding_kernel(
    x_con_ref,   # [Bt, CON]          f32
    x_cat_ref,   # [Bt, CAT]          i32
    params_ref,  # [CLS + 2*CON, L]   f32   (cls | w_con | b_con stacked)
    emb_ref,     # [CAT, MAX_DEG, L]  f32   (zero-padded embedding tables)
    out_ref,     # [Bt, F*L]          f32   (lane-dense flattened output)
    *,
    cls_num: int,
    con_num: int,
    cat_num: int,
    latent: int,
):
    Bt = out_ref.shape[0]
    L = latent
    max_deg = emb_ref.shape[1]

    # ---- CLS tokens: broadcast parameter row(s) across the batch ------------
    for k in range(cls_num):
        row = params_ref[k:k + 1, :]                          # [1, L]
        off = k * L
        out_ref[:, off:off + L] = jnp.broadcast_to(row, (Bt, L))

    # ---- Continuous features: relu(x * w + b) -------------------------------
    # Linear(1, L) on a scalar input collapses to a broadcast multiply-add.
    for c in range(con_num):
        xc = x_con_ref[:, c:c + 1]                            # [Bt, 1]
        w = params_ref[cls_num + c:cls_num + c + 1, :]        # [1, L]
        b = params_ref[cls_num + con_num + c:
                       cls_num + con_num + c + 1, :]          # [1, L]
        off = (cls_num + c) * L
        out_ref[:, off:off + L] = jnp.maximum(xc * w + b, 0.0)

    # ---- Categorical features: where-select sum over the (small) degree -----
    # acc[b, l] = sum_d (id[b] == d) ? emb[c, d, l] : 0 ; pure VPU, bounded
    # [Bt, L] intermediate regardless of batch tile size.
    if cat_num > 0:
        emb = emb_ref[...]                                    # [CAT, DEG, L]
        for c in range(cat_num):
            # Clamp ids into the padded table (matches gather semantics of the
            # reference; valid inputs are unaffected).
            ids = jnp.clip(x_cat_ref[:, c:c + 1], 0, max_deg - 1)   # [Bt, 1]
            acc = jnp.where(ids == 0, emb[c, 0:1, :], 0.0)          # [Bt, L]
            for d in range(1, max_deg):
                acc = acc + jnp.where(ids == d, emb[c, d:d + 1, :], 0.0)
            off = (cls_num + con_num + c) * L
            out_ref[:, off:off + L] = acc


def input_graph_embedding(x_con, x_cat, cls_param, w_con, b_con, emb_tables,
                          *, batch_tile=512):
    """Coalesces parameters into one slab, tiles/pads the batch axis, calls the
    Pallas kernel on a lane-dense [B, F*L] output and reshapes back."""
    x_con = x_con.astype(jnp.float32)
    x_cat = x_cat.astype(jnp.int32)

    B, con_num = x_con.shape
    cat_num = x_cat.shape[1]
    cls_num, L = cls_param.shape
    max_deg = emb_tables.shape[1]
    F = cls_num + con_num + cat_num

    # One [CLS + 2*CON, L] parameter slab -> one DMA instead of three.
    params = jnp.concatenate([cls_param, w_con, b_con], axis=0).astype(jnp.float32)
    emb_tables = emb_tables.astype(jnp.float32)

    # Batch tiling: large tiles to amortize the ~0.35us/step overhead; pad the
    # batch so it divides evenly (padded rows use valid zero ids).
    if B <= batch_tile:
        Bt = B
    else:
        Bt = max(8, (batch_tile // 8) * 8)      # keep sublane-aligned tiles
    grid_b = -(-B // Bt)
    B_pad = grid_b * Bt
    if B_pad != B:
        x_con = jnp.pad(x_con, ((0, B_pad - B), (0, 0)))
        x_cat = jnp.pad(x_cat, ((0, B_pad - B), (0, 0)))

    kernel = functools.partial(
        _input_graph_embedding_kernel,
        cls_num=cls_num, con_num=con_num, cat_num=cat_num, latent=L)

    # Explicit scoped-VMEM budget (double-buffered tiles + resident slabs,
    # generous margin); never below the 32 MiB default.
    est = 4 * (2 * Bt * (con_num + cat_num + F * L)
               + 2 * (cls_num + 2 * con_num) * L
               + 2 * cat_num * max_deg * L)
    vmem_limit = int(max(32 * 1024 * 1024, 2 * est))

    out_flat = pl.pallas_call(
        kernel,
        out_shape=jax.ShapeDtypeStruct((B_pad, F * L), jnp.float32),
        grid_spec=pltpu.PrefetchScalarGridSpec(
            num_scalar_prefetch=0,
            grid=(grid_b,),
            in_specs=[
                pl.BlockSpec((Bt, con_num), lambda i: (i, 0)),
                pl.BlockSpec((Bt, cat_num), lambda i: (i, 0)),
                pl.BlockSpec((cls_num + 2 * con_num, L), lambda i: (0, 0)),
                pl.BlockSpec((cat_num, max_deg, L), lambda i: (0, 0, 0)),
            ],
            out_specs=pl.BlockSpec((Bt, F * L), lambda i: (i, 0)),
        ),
        compiler_params=pltpu.CompilerParams(
            dimension_semantics=("parallel",),
            vmem_limit_bytes=vmem_limit),
    )(x_con, x_cat, params, emb_tables)

    out_flat = out_flat[:B] if B_pad != B else out_flat
    return out_flat.reshape(B, F, L)          # contiguous reshape: free


def _reference(x_con, x_cat, cls_param, w_con, b_con, emb_tables):
    B = x_con.shape[0]
    cls_part = jnp.broadcast_to(cls_param[None], (B,) + cls_param.shape)
    con_part = jax.nn.relu(x_con[:, :, None] * w_con[None] + b_con[None])
    cat_part = jnp.stack(
        [emb_tables[c][x_cat[:, c]] for c in range(x_cat.shape[1])], axis=1)
    return jnp.concatenate([cls_part, con_part, cat_part], axis=1)


if __name__ == "__main__":
    # Module hyper-parameters (small, consistent with forward()).
    batch = 8
    con_features_num = 3
    cat_features_num = 2
    cat_features_degrees = [5, 7]
    latent_space_size = 32
    cls_num = 1
    max_deg = max(cat_features_degrees)

    key = jax.random.PRNGKey(0)
    k_cls, k_w, k_b, k_emb, k_xc, k_xcat = jax.random.split(key, 6)

    # Deterministic parameter init (synthetic, not a checkpoint load).
    xav = np.sqrt(6.0 / (cls_num + latent_space_size))
    cls_param = jax.random.uniform(
        k_cls, (cls_num, latent_space_size), jnp.float32, -xav, xav)
    w_con = jax.random.uniform(
        k_w, (con_features_num, latent_space_size), jnp.float32, -1.0, 1.0)
    b_con = jax.random.uniform(
        k_b, (con_features_num, latent_space_size), jnp.float32, -1.0, 1.0)

    # Padded embedding tables: [cat_features_num, max_deg, latent]; rows past a
    # table's true degree are zero and never indexed by valid inputs.
    emb_full = jax.random.normal(
        k_emb, (cat_features_num, max_deg, latent_space_size), jnp.float32)
    deg_mask = (np.arange(max_deg)[None, :]
                < np.asarray(cat_features_degrees)[:, None]).astype(np.float32)
    emb_tables = emb_full * jnp.asarray(deg_mask)[:, :, None]

    # Inputs.
    x_con = jax.random.normal(k_xc, (batch, con_features_num), jnp.float32)
    x_cat = jnp.stack(
        [jax.random.randint(jax.random.fold_in(k_xcat, i), (batch,), 0, d)
         for i, d in enumerate(cat_features_degrees)],
        axis=1,
    ).astype(jnp.int32)

    out = input_graph_embedding(x_con, x_cat, cls_param, w_con, b_con, emb_tables)
    out = jax.block_until_ready(out)

    ref = _reference(x_con, x_cat, cls_param, w_con, b_con, emb_tables)
    assert out.shape == (batch,
                         cls_num + con_features_num + cat_features_num,
                         latent_space_size)
    np.testing.assert_allclose(np.asarray(out), np.asarray(ref),
                               rtol=1e-5, atol=1e-5)
    print("KERNEL_OK")
</pallas_src>

<mosaic_0001>
module attributes {stable_mosaic.version = 11 : i64} {
  func.func @_input_graph_embedding_kernel(%arg0: i32, %arg1: memref<8x3xf32, #tpu.memory_space<vmem>>, %arg2: memref<8x2xi32, #tpu.memory_space<vmem>>, %arg3: memref<7x32xf32, #tpu.memory_space<vmem>>, %arg4: memref<2x7x32xf32, #tpu.memory_space<vmem>>, %arg5: memref<8x192xf32, #tpu.memory_space<vmem>>) attributes {dimension_semantics = [#tpu.dimension_semantics<parallel>], iteration_bounds = array<i64: 1>, scalar_prefetch = 0 : i64, scratch_operands = 0 : i64, tpu.core_type = #tpu.core_type<tc>, window_params = [{transform_indices = @transform_0, window_bounds = array<i64: 8, 3>}, {transform_indices = @transform_1, window_bounds = array<i64: 8, 2>}, {pipeline_mode = #tpu.pipeline_mode<synchronous>, transform_indices = @transform_2, window_bounds = array<i64: 7, 32>}, {pipeline_mode = #tpu.pipeline_mode<synchronous>, transform_indices = @transform_3, window_bounds = array<i64: 2, 7, 32>}, {transform_indices = @transform_4, window_bounds = array<i64: 8, 192>}]} {
    %c0 = arith.constant 0 : index
    %c0_0 = arith.constant 0 : index
    %0 = vector.load %arg3[%c0, %c0_0] : memref<7x32xf32, #tpu.memory_space<vmem>>, vector<1x32xf32>
    %1 = vector.shape_cast %0 : vector<1x32xf32> to vector<1x32xf32>
    %2 = vector.broadcast %1 : vector<1x32xf32> to vector<8x32xf32>
    %c0_1 = arith.constant 0 : index
    %c0_2 = arith.constant 0 : index
    %3 = vector.load %arg5[%c0_1, %c0_2] : memref<8x192xf32, #tpu.memory_space<vmem>>, vector<8x32xf32>
    tpu.vector_store %arg5[%c0_1, %c0_2], %2 {strides = array<i32>} : memref<8x192xf32, #tpu.memory_space<vmem>>, vector<8x32xf32>,
    %c0_3 = arith.constant 0 : index
    %c0_4 = arith.constant 0 : index
    %4 = vector.load %arg1[%c0_3, %c0_4] : memref<8x3xf32, #tpu.memory_space<vmem>>, vector<8x1xf32>
    %c1 = arith.constant 1 : index
    %c0_5 = arith.constant 0 : index
    %5 = vector.load %arg3[%c1, %c0_5] : memref<7x32xf32, #tpu.memory_space<vmem>>, vector<1x32xf32>
    %c4 = arith.constant 4 : index
    %c0_6 = arith.constant 0 : index
    %6 = vector.load %arg3[%c4, %c0_6] : memref<7x32xf32, #tpu.memory_space<vmem>>, vector<1x32xf32>
    %7 = vector.broadcast %4 : vector<8x1xf32> to vector<8x32xf32>
    %8 = vector.broadcast %5 : vector<1x32xf32> to vector<8x32xf32>
    %9 = arith.mulf %7, %8 : vector<8x32xf32>
    %10 = vector.broadcast %6 : vector<1x32xf32> to vector<8x32xf32>
    %11 = arith.addf %9, %10 : vector<8x32xf32>
    %cst = arith.constant 0.000000e+00 : f32
    %12 = vector.broadcast %cst : f32 to vector<8x32xf32>
    %13 = arith.maximumf %11, %12 : vector<8x32xf32>
    %c0_7 = arith.constant 0 : index
    %c32 = arith.constant 32 : index
    %14 = vector.load %arg5[%c0_7, %c32] : memref<8x192xf32, #tpu.memory_space<vmem>>, vector<8x32xf32>
    tpu.vector_store %arg5[%c0_7, %c32], %13 {strides = array<i32>} : memref<8x192xf32, #tpu.memory_space<vmem>>, vector<8x32xf32>,
    %c0_8 = arith.constant 0 : index
    %c1_9 = arith.constant 1 : index
    %15 = vector.load %arg1[%c0_8, %c1_9] : memref<8x3xf32, #tpu.memory_space<vmem>>, vector<8x1xf32>
    %c2 = arith.constant 2 : index
    %c0_10 = arith.constant 0 : index
    %16 = vector.load %arg3[%c2, %c0_10] : memref<7x32xf32, #tpu.memory_space<vmem>>, vector<1x32xf32>
    %c5 = arith.constant 5 : index
    %c0_11 = arith.constant 0 : index
    %17 = vector.load %arg3[%c5, %c0_11] : memref<7x32xf32, #tpu.memory_space<vmem>>, vector<1x32xf32>
    %18 = vector.broadcast %15 : vector<8x1xf32> to vector<8x32xf32>
    %19 = vector.broadcast %16 : vector<1x32xf32> to vector<8x32xf32>
    %20 = arith.mulf %18, %19 : vector<8x32xf32>
    %21 = vector.broadcast %17 : vector<1x32xf32> to vector<8x32xf32>
    %22 = arith.addf %20, %21 : vector<8x32xf32>
    %cst_12 = arith.constant 0.000000e+00 : f32
    %23 = vector.broadcast %cst_12 : f32 to vector<8x32xf32>
    %24 = arith.maximumf %22, %23 : vector<8x32xf32>
    %c0_13 = arith.constant 0 : index
    %c64 = arith.constant 64 : index
    %25 = vector.load %arg5[%c0_13, %c64] : memref<8x192xf32, #tpu.memory_space<vmem>>, vector<8x32xf32>
    tpu.vector_store %arg5[%c0_13, %c64], %24 {strides = array<i32>} : memref<8x192xf32, #tpu.memory_space<vmem>>, vector<8x32xf32>,
    %c0_14 = arith.constant 0 : index
    %c2_15 = arith.constant 2 : index
    %26 = vector.load %arg1[%c0_14, %c2_15] : memref<8x3xf32, #tpu.memory_space<vmem>>, vector<8x1xf32>
    %c3 = arith.constant 3 : index
    %c0_16 = arith.constant 0 : index
    %27 = vector.load %arg3[%c3, %c0_16] : memref<7x32xf32, #tpu.memory_space<vmem>>, vector<1x32xf32>
    %c6 = arith.constant 6 : index
    %c0_17 = arith.constant 0 : index
    %28 = vector.load %arg3[%c6, %c0_17] : memref<7x32xf32, #tpu.memory_space<vmem>>, vector<1x32xf32>
    %29 = vector.broadcast %26 : vector<8x1xf32> to vector<8x32xf32>
    %30 = vector.broadcast %27 : vector<1x32xf32> to vector<8x32xf32>
    %31 = arith.mulf %29, %30 : vector<8x32xf32>
    %32 = vector.broadcast %28 : vector<1x32xf32> to vector<8x32xf32>
    %33 = arith.addf %31, %32 : vector<8x32xf32>
    %cst_18 = arith.constant 0.000000e+00 : f32
    %34 = vector.broadcast %cst_18 : f32 to vector<8x32xf32>
    %35 = arith.maximumf %33, %34 : vector<8x32xf32>
    %c0_19 = arith.constant 0 : index
    %c96 = arith.constant 96 : index
    %36 = vector.load %arg5[%c0_19, %c96] : memref<8x192xf32, #tpu.memory_space<vmem>>, vector<8x32xf32>
    tpu.vector_store %arg5[%c0_19, %c96], %35 {strides = array<i32>} : memref<8x192xf32, #tpu.memory_space<vmem>>, vector<8x32xf32>,
    %c0_20 = arith.constant 0 : index
    %c0_21 = arith.constant 0 : index
    %c0_22 = arith.constant 0 : index
    %37 = vector.load %arg4[%c0_20, %c0_21, %c0_22] : memref<2x7x32xf32, #tpu.memory_space<vmem>>, vector<2x7x32xf32>
    %c0_23 = arith.constant 0 : index
    %c0_24 = arith.constant 0 : index
    %38 = vector.load %arg2[%c0_23, %c0_24] : memref<8x2xi32, #tpu.memory_space<vmem>>, vector<8x1xi32>
    %c0_i32 = arith.constant 0 : i32
    %c6_i32 = arith.constant 6 : i32
    %39 = vector.broadcast %c0_i32 : i32 to vector<8x1xi32>
    %40 = arith.maxsi %39, %38 : vector<8x1xi32>
    %41 = vector.broadcast %c6_i32 : i32 to vector<8x1xi32>
    %42 = arith.minsi %41, %40 : vector<8x1xi32>
    %c0_i32_25 = arith.constant 0 : i32
    %43 = vector.broadcast %c0_i32_25 : i32 to vector<8x1xi32>
    %44 = arith.cmpi eq, %42, %43 : vector<8x1xi32>
    %45 = vector.extract_strided_slice %37 {offsets = [0, 0, 0], sizes = [1, 1, 32], strides = [1, 1, 1]} : vector<2x7x32xf32> to vector<1x1x32xf32>
    %46 = vector.shape_cast %45 : vector<1x1x32xf32> to vector<1x32xf32>
    %cst_26 = arith.constant 0.000000e+00 : f32
    %47 = vector.shape_cast %44 : vector<8x1xi1> to vector<8x1xi1>
    %48 = vector.broadcast %47 : vector<8x1xi1> to vector<8x32xi1>
    %49 = vector.shape_cast %46 : vector<1x32xf32> to vector<1x32xf32>
    %50 = vector.broadcast %49 : vector<1x32xf32> to vector<8x32xf32>
    %51 = vector.broadcast %cst_26 : f32 to vector<8x32xf32>
    %52 = arith.select %48, %50, %51 : vector<8x32xi1>, vector<8x32xf32>
    %c1_i32 = arith.constant 1 : i32
    %53 = vector.broadcast %c1_i32 : i32 to vector<8x1xi32>
    %54 = arith.cmpi eq, %42, %53 : vector<8x1xi32>
    %55 = vector.extract_strided_slice %37 {offsets = [0, 1, 0], sizes = [1, 1, 32], strides = [1, 1, 1]} : vector<2x7x32xf32> to vector<1x1x32xf32>
    %56 = vector.shape_cast %55 : vector<1x1x32xf32> to vector<1x32xf32>
    %cst_27 = arith.constant 0.000000e+00 : f32
    %57 = vector.shape_cast %54 : vector<8x1xi1> to vector<8x1xi1>
    %58 = vector.broadcast %57 : vector<8x1xi1> to vector<8x32xi1>
    %59 = vector.shape_cast %56 : vector<1x32xf32> to vector<1x32xf32>
    %60 = vector.broadcast %59 : vector<1x32xf32> to vector<8x32xf32>
    %61 = vector.broadcast %cst_27 : f32 to vector<8x32xf32>
    %62 = arith.select %58, %60, %61 : vector<8x32xi1>, vector<8x32xf32>
    %63 = arith.addf %52, %62 : vector<8x32xf32>
    %c2_i32 = arith.constant 2 : i32
    %64 = vector.broadcast %c2_i32 : i32 to vector<8x1xi32>
    %65 = arith.cmpi eq, %42, %64 : vector<8x1xi32>
    %66 = vector.extract_strided_slice %37 {offsets = [0, 2, 0], sizes = [1, 1, 32], strides = [1, 1, 1]} : vector<2x7x32xf32> to vector<1x1x32xf32>
    %67 = vector.shape_cast %66 : vector<1x1x32xf32> to vector<1x32xf32>
    %cst_28 = arith.constant 0.000000e+00 : f32
    %68 = vector.shape_cast %65 : vector<8x1xi1> to vector<8x1xi1>
    %69 = vector.broadcast %68 : vector<8x1xi1> to vector<8x32xi1>
    %70 = vector.shape_cast %67 : vector<1x32xf32> to vector<1x32xf32>
    %71 = vector.broadcast %70 : vector<1x32xf32> to vector<8x32xf32>
    %72 = vector.broadcast %cst_28 : f32 to vector<8x32xf32>
    %73 = arith.select %69, %71, %72 : vector<8x32xi1>, vector<8x32xf32>
    %74 = arith.addf %63, %73 : vector<8x32xf32>
    %c3_i32 = arith.constant 3 : i32
    %75 = vector.broadcast %c3_i32 : i32 to vector<8x1xi32>
    %76 = arith.cmpi eq, %42, %75 : vector<8x1xi32>
    %77 = vector.extract_strided_slice %37 {offsets = [0, 3, 0], sizes = [1, 1, 32], strides = [1, 1, 1]} : vector<2x7x32xf32> to vector<1x1x32xf32>
    %78 = vector.shape_cast %77 : vector<1x1x32xf32> to vector<1x32xf32>
    %cst_29 = arith.constant 0.000000e+00 : f32
    %79 = vector.shape_cast %76 : vector<8x1xi1> to vector<8x1xi1>
    %80 = vector.broadcast %79 : vector<8x1xi1> to vector<8x32xi1>
    %81 = vector.shape_cast %78 : vector<1x32xf32> to vector<1x32xf32>
    %82 = vector.broadcast %81 : vector<1x32xf32> to vector<8x32xf32>
    %83 = vector.broadcast %cst_29 : f32 to vector<8x32xf32>
    %84 = arith.select %80, %82, %83 : vector<8x32xi1>, vector<8x32xf32>
    %85 = arith.addf %74, %84 : vector<8x32xf32>
    %c4_i32 = arith.constant 4 : i32
    %86 = vector.broadcast %c4_i32 : i32 to vector<8x1xi32>
    %87 = arith.cmpi eq, %42, %86 : vector<8x1xi32>
    %88 = vector.extract_strided_slice %37 {offsets = [0, 4, 0], sizes = [1, 1, 32], strides = [1, 1, 1]} : vector<2x7x32xf32> to vector<1x1x32xf32>
    %89 = vector.shape_cast %88 : vector<1x1x32xf32> to vector<1x32xf32>
    %cst_30 = arith.constant 0.000000e+00 : f32
    %90 = vector.shape_cast %87 : vector<8x1xi1> to vector<8x1xi1>
    %91 = vector.broadcast %90 : vector<8x1xi1> to vector<8x32xi1>
    %92 = vector.shape_cast %89 : vector<1x32xf32> to vector<1x32xf32>
    %93 = vector.broadcast %92 : vector<1x32xf32> to vector<8x32xf32>
    %94 = vector.broadcast %cst_30 : f32 to vector<8x32xf32>
    %95 = arith.select %91, %93, %94 : vector<8x32xi1>, vector<8x32xf32>
    %96 = arith.addf %85, %95 : vector<8x32xf32>
    %c5_i32 = arith.constant 5 : i32
    %97 = vector.broadcast %c5_i32 : i32 to vector<8x1xi32>
    %98 = arith.cmpi eq, %42, %97 : vector<8x1xi32>
    %99 = vector.extract_strided_slice %37 {offsets = [0, 5, 0], sizes = [1, 1, 32], strides = [1, 1, 1]} : vector<2x7x32xf32> to vector<1x1x32xf32>
    %100 = vector.shape_cast %99 : vector<1x1x32xf32> to vector<1x32xf32>
    %cst_31 = arith.constant 0.000000e+00 : f32
    %101 = vector.shape_cast %98 : vector<8x1xi1> to vector<8x1xi1>
    %102 = vector.broadcast %101 : vector<8x1xi1> to vector<8x32xi1>
    %103 = vector.shape_cast %100 : vector<1x32xf32> to vector<1x32xf32>
    %104 = vector.broadcast %103 : vector<1x32xf32> to vector<8x32xf32>
    %105 = vector.broadcast %cst_31 : f32 to vector<8x32xf32>
    %106 = arith.select %102, %104, %105 : vector<8x32xi1>, vector<8x32xf32>
    %107 = arith.addf %96, %106 : vector<8x32xf32>
    %c6_i32_32 = arith.constant 6 : i32
    %108 = vector.broadcast %c6_i32_32 : i32 to vector<8x1xi32>
    %109 = arith.cmpi eq, %42, %108 : vector<8x1xi32>
    %110 = vector.extract_strided_slice %37 {offsets = [0, 6, 0], sizes = [1, 1, 32], strides = [1, 1, 1]} : vector<2x7x32xf32> to vector<1x1x32xf32>
    %111 = vector.shape_cast %110 : vector<1x1x32xf32> to vector<1x32xf32>
    %cst_33 = arith.constant 0.000000e+00 : f32
    %112 = vector.shape_cast %109 : vector<8x1xi1> to vector<8x1xi1>
    %113 = vector.broadcast %112 : vector<8x1xi1> to vector<8x32xi1>
    %114 = vector.shape_cast %111 : vector<1x32xf32> to vector<1x32xf32>
    %115 = vector.broadcast %114 : vector<1x32xf32> to vector<8x32xf32>
    %116 = vector.broadcast %cst_33 : f32 to vector<8x32xf32>
    %117 = arith.select %113, %115, %116 : vector<8x32xi1>, vector<8x32xf32>
    %118 = arith.addf %107, %117 : vector<8x32xf32>
    %c0_34 = arith.constant 0 : index
    %c128 = arith.constant 128 : index
    %119 = vector.load %arg5[%c0_34, %c128] : memref<8x192xf32, #tpu.memory_space<vmem>>, vector<8x32xf32>
    tpu.vector_store %arg5[%c0_34, %c128], %118 {strides = array<i32>} : memref<8x192xf32, #tpu.memory_space<vmem>>, vector<8x32xf32>,
    %c0_35 = arith.constant 0 : index
    %c1_36 = arith.constant 1 : index
    %120 = vector.load %arg2[%c0_35, %c1_36] : memref<8x2xi32, #tpu.memory_space<vmem>>, vector<8x1xi32>
    %c0_i32_37 = arith.constant 0 : i32
    %c6_i32_38 = arith.constant 6 : i32
    %121 = vector.broadcast %c0_i32_37 : i32 to vector<8x1xi32>
    %122 = arith.maxsi %121, %120 : vector<8x1xi32>
    %123 = vector.broadcast %c6_i32_38 : i32 to vector<8x1xi32>
    %124 = arith.minsi %123, %122 : vector<8x1xi32>
    %c0_i32_39 = arith.constant 0 : i32
    %125 = vector.broadcast %c0_i32_39 : i32 to vector<8x1xi32>
    %126 = arith.cmpi eq, %124, %125 : vector<8x1xi32>
    %127 = vector.extract_strided_slice %37 {offsets = [1, 0, 0], sizes = [1, 1, 32], strides = [1, 1, 1]} : vector<2x7x32xf32> to vector<1x1x32xf32>
    %128 = vector.shape_cast %127 : vector<1x1x32xf32> to vector<1x32xf32>
    %cst_40 = arith.constant 0.000000e+00 : f32
    %129 = vector.shape_cast %126 : vector<8x1xi1> to vector<8x1xi1>
    %130 = vector.broadcast %129 : vector<8x1xi1> to vector<8x32xi1>
    %131 = vector.shape_cast %128 : vector<1x32xf32> to vector<1x32xf32>
    %132 = vector.broadcast %131 : vector<1x32xf32> to vector<8x32xf32>
    %133 = vector.broadcast %cst_40 : f32 to vector<8x32xf32>
    %134 = arith.select %130, %132, %133 : vector<8x32xi1>, vector<8x32xf32>
    %c1_i32_41 = arith.constant 1 : i32
    %135 = vector.broadcast %c1_i32_41 : i32 to vector<8x1xi32>
    %136 = arith.cmpi eq, %124, %135 : vector<8x1xi32>
    %137 = vector.extract_strided_slice %37 {offsets = [1, 1, 0], sizes = [1, 1, 32], strides = [1, 1, 1]} : vector<2x7x32xf32> to vector<1x1x32xf32>
    %138 = vector.shape_cast %137 : vector<1x1x32xf32> to vector<1x32xf32>
    %cst_42 = arith.constant 0.000000e+00 : f32
    %139 = vector.shape_cast %136 : vector<8x1xi1> to vector<8x1xi1>
    %140 = vector.broadcast %139 : vector<8x1xi1> to vector<8x32xi1>
    %141 = vector.shape_cast %138 : vector<1x32xf32> to vector<1x32xf32>
    %142 = vector.broadcast %141 : vector<1x32xf32> to vector<8x32xf32>
    %143 = vector.broadcast %cst_42 : f32 to vector<8x32xf32>
    %144 = arith.select %140, %142, %143 : vector<8x32xi1>, vector<8x32xf32>
    %145 = arith.addf %134, %144 : vector<8x32xf32>
    %c2_i32_43 = arith.constant 2 : i32
    %146 = vector.broadcast %c2_i32_43 : i32 to vector<8x1xi32>
    %147 = arith.cmpi eq, %124, %146 : vector<8x1xi32>
    %148 = vector.extract_strided_slice %37 {offsets = [1, 2, 0], sizes = [1, 1, 32], strides = [1, 1, 1]} : vector<2x7x32xf32> to vector<1x1x32xf32>
    %149 = vector.shape_cast %148 : vector<1x1x32xf32> to vector<1x32xf32>
    %cst_44 = arith.constant 0.000000e+00 : f32
    %150 = vector.shape_cast %147 : vector<8x1xi1> to vector<8x1xi1>
    %151 = vector.broadcast %150 : vector<8x1xi1> to vector<8x32xi1>
    %152 = vector.shape_cast %149 : vector<1x32xf32> to vector<1x32xf32>
    %153 = vector.broadcast %152 : vector<1x32xf32> to vector<8x32xf32>
    %154 = vector.broadcast %cst_44 : f32 to vector<8x32xf32>
    %155 = arith.select %151, %153, %154 : vector<8x32xi1>, vector<8x32xf32>
    %156 = arith.addf %145, %155 : vector<8x32xf32>
    %c3_i32_45 = arith.constant 3 : i32
    %157 = vector.broadcast %c3_i32_45 : i32 to vector<8x1xi32>
    %158 = arith.cmpi eq, %124, %157 : vector<8x1xi32>
    %159 = vector.extract_strided_slice %37 {offsets = [1, 3, 0], sizes = [1, 1, 32], strides = [1, 1, 1]} : vector<2x7x32xf32> to vector<1x1x32xf32>
    %160 = vector.shape_cast %159 : vector<1x1x32xf32> to vector<1x32xf32>
    %cst_46 = arith.constant 0.000000e+00 : f32
    %161 = vector.shape_cast %158 : vector<8x1xi1> to vector<8x1xi1>
    %162 = vector.broadcast %161 : vector<8x1xi1> to vector<8x32xi1>
    %163 = vector.shape_cast %160 : vector<1x32xf32> to vector<1x32xf32>
    %164 = vector.broadcast %163 : vector<1x32xf32> to vector<8x32xf32>
    %165 = vector.broadcast %cst_46 : f32 to vector<8x32xf32>
    %166 = arith.select %162, %164, %165 : vector<8x32xi1>, vector<8x32xf32>
    %167 = arith.addf %156, %166 : vector<8x32xf32>
    %c4_i32_47 = arith.constant 4 : i32
    %168 = vector.broadcast %c4_i32_47 : i32 to vector<8x1xi32>
    %169 = arith.cmpi eq, %124, %168 : vector<8x1xi32>
    %170 = vector.extract_strided_slice %37 {offsets = [1, 4, 0], sizes = [1, 1, 32], strides = [1, 1, 1]} : vector<2x7x32xf32> to vector<1x1x32xf32>
    %171 = vector.shape_cast %170 : vector<1x1x32xf32> to vector<1x32xf32>
    %cst_48 = arith.constant 0.000000e+00 : f32
    %172 = vector.shape_cast %169 : vector<8x1xi1> to vector<8x1xi1>
    %173 = vector.broadcast %172 : vector<8x1xi1> to vector<8x32xi1>
    %174 = vector.shape_cast %171 : vector<1x32xf32> to vector<1x32xf32>
    %175 = vector.broadcast %174 : vector<1x32xf32> to vector<8x32xf32>
    %176 = vector.broadcast %cst_48 : f32 to vector<8x32xf32>
    %177 = arith.select %173, %175, %176 : vector<8x32xi1>, vector<8x32xf32>
    %178 = arith.addf %167, %177 : vector<8x32xf32>
    %c5_i32_49 = arith.constant 5 : i32
    %179 = vector.broadcast %c5_i32_49 : i32 to vector<8x1xi32>
    %180 = arith.cmpi eq, %124, %179 : vector<8x1xi32>
    %181 = vector.extract_strided_slice %37 {offsets = [1, 5, 0], sizes = [1, 1, 32], strides = [1, 1, 1]} : vector<2x7x32xf32> to vector<1x1x32xf32>
    %182 = vector.shape_cast %181 : vector<1x1x32xf32> to vector<1x32xf32>
    %cst_50 = arith.constant 0.000000e+00 : f32
    %183 = vector.shape_cast %180 : vector<8x1xi1> to vector<8x1xi1>
    %184 = vector.broadcast %183 : vector<8x1xi1> to vector<8x32xi1>
    %185 = vector.shape_cast %182 : vector<1x32xf32> to vector<1x32xf32>
    %186 = vector.broadcast %185 : vector<1x32xf32> to vector<8x32xf32>
    %187 = vector.broadcast %cst_50 : f32 to vector<8x32xf32>
    %188 = arith.select %184, %186, %187 : vector<8x32xi1>, vector<8x32xf32>
    %189 = arith.addf %178, %188 : vector<8x32xf32>
    %c6_i32_51 = arith.constant 6 : i32
    %190 = vector.broadcast %c6_i32_51 : i32 to vector<8x1xi32>
    %191 = arith.cmpi eq, %124, %190 : vector<8x1xi32>
    %192 = vector.extract_strided_slice %37 {offsets = [1, 6, 0], sizes = [1, 1, 32], strides = [1, 1, 1]} : vector<2x7x32xf32> to vector<1x1x32xf32>
    %193 = vector.shape_cast %192 : vector<1x1x32xf32> to vector<1x32xf32>
    %cst_52 = arith.constant 0.000000e+00 : f32
    %194 = vector.shape_cast %191 : vector<8x1xi1> to vector<8x1xi1>
    %195 = vector.broadcast %194 : vector<8x1xi1> to vector<8x32xi1>
    %196 = vector.shape_cast %193 : vector<1x32xf32> to vector<1x32xf32>
    %197 = vector.broadcast %196 : vector<1x32xf32> to vector<8x32xf32>
    %198 = vector.broadcast %cst_52 : f32 to vector<8x32xf32>
    %199 = arith.select %195, %197, %198 : vector<8x32xi1>, vector<8x32xf32>
    %200 = arith.addf %189, %199 : vector<8x32xf32>
    %c0_53 = arith.constant 0 : index
    %c160 = arith.constant 160 : index
    %201 = vector.load %arg5[%c0_53, %c160] : memref<8x192xf32, #tpu.memory_space<vmem>>, vector<8x32xf32>
    tpu.vector_store %arg5[%c0_53, %c160], %200 {strides = array<i32>} : memref<8x192xf32, #tpu.memory_space<vmem>>, vector<8x32xf32>,
    return
  }
  func.func @transform_0(%arg0: i32) -> (i32, i32) {
    %c0_i32 = arith.constant 0 : i32
    %c0_i32_0 = arith.constant 0 : i32
    return %arg0, %c0_i32 : i32, i32
  }
  func.func @transform_1(%arg0: i32) -> (i32, i32) {
    %c0_i32 = arith.constant 0 : i32
    %c0_i32_0 = arith.constant 0 : i32
    return %arg0, %c0_i32 : i32, i32
  }
  func.func @transform_2(%arg0: i32) -> (i32, i32) {
    %c0_i32 = arith.constant 0 : i32
    %c0_i32_0 = arith.constant 0 : i32
    %c0_i32_1 = arith.constant 0 : i32
    return %c0_i32, %c0_i32_0 : i32, i32
  }
  func.func @transform_3(%arg0: i32) -> (i32, i32, i32) {
    %c0_i32 = arith.constant 0 : i32
    %c0_i32_0 = arith.constant 0 : i32
    %c0_i32_1 = arith.constant 0 : i32
    %c0_i32_2 = arith.constant 0 : i32
    return %c0_i32, %c0_i32_0, %c0_i32_1 : i32, i32, i32
  }
  func.func @transform_4(%arg0: i32) -> (i32, i32) {
    %c0_i32 = arith.constant 0 : i32
    %c0_i32_0 = arith.constant 0 : i32
    return %arg0, %c0_i32 : i32, i32
  }
}

</mosaic_0001>

<llo_original>
// kernel: tpu_custom_call.1
$region0: #{tpu_custom_call.1}
  #allocation0 [shape = 'u32[]', space=smem, size = 0x4, offset = 0x4, fixed_abs, tag = 'smem constant byte address 0x4 - core index']
  #allocation1 [shape = 'u32[72,128]{1,0:T(1,128)}', space=vmem, size = 0x9000, scoped, tag = 'internal scratch']
  %s0 = inlined_call_operand.vmem [shape: f32[8,3], index: 0, kind: input, shape index: {}]
  %s1 = inlined_call_operand.vmem [shape: s32[8,2], index: 1, kind: input, shape index: {}]
  %s2 = inlined_call_operand.vmem [shape: f32[7,32], index: 2, kind: input, shape index: {}]
  %s3 = inlined_call_operand.vmem [shape: f32[2,7,32], index: 3, kind: input, shape index: {}]
  %s4 = inlined_call_operand.hbm [shape: f32[8,192], index: 4, kind: output, shape index: {}]
  %s5 = sld [smem:[#allocation0]]
  $region26: #{tpu_custom_call.1} parent=0
    _
  %s7 = ssub.s32 1, %s5
  %s8 = scalar_select 0, %s7, %s5
  $region1: #{tpu_custom_call.1} parent=0
    #allocation2 [shape = 'u8[8192]{0}', space=vmem, size = 0x2000, scoped, tag = 'output window, operand 0, single buffered']
    #allocation3 [shape = 's32[1]{0}', space=sflag, size = 0x4, scoped, tag = 'scoped memory for tpu_custom_call.1']
    %9 = vsyncpa [#allocation3], 0
    // Predicated region
    $region2: #{tpu_custom_call.1} parent=1 // pred_check
      _
    $region3: #{tpu_custom_call.1} parent=1 // pred_check_branch
      %11 = sbr.rel (0) target = $region5
    $region4: #{tpu_custom_call.1} parent=1 // pred_region
      _
    $region5: #{tpu_custom_call.1} parent=1 // pred_fallthru
      _
    // Predicated region
    $region6: #{tpu_custom_call.1} parent=1 // pred_check
      _
    $region7: #{tpu_custom_call.1} parent=1 // pred_check_branch
      %13 = sbr.rel (0) target = $region9
    $region8: #{tpu_custom_call.1} parent=1 // pred_region
      _
    $region9: #{tpu_custom_call.1} parent=1 // pred_fallthru
      _
    // Predicated region
    $region10: #{tpu_custom_call.1} parent=1 // pred_check
      _
    $region11: #{tpu_custom_call.1} parent=1 // pred_check_branch
      %15 = sbr.rel (0) target = $region13
    $region12: #{tpu_custom_call.1} parent=1 // pred_region
      _
    $region13: #{tpu_custom_call.1} parent=1 // pred_fallthru
      _
    // Predicated region
    $region14: #{tpu_custom_call.1} parent=1 // pred_check
      _
    $region15: #{tpu_custom_call.1} parent=1 // pred_check_branch
      %17 = sbr.rel (0) target = $region17
    $region16: #{tpu_custom_call.1} parent=1 // pred_region
      _
    $region17: #{tpu_custom_call.1} parent=1 // pred_fallthru
      _
    %v18 = vld [vmem:[%s2] sm:$0x1]
    %v19 = vperm.slane %v18, 0
    %vm20 = vcmask 261120
    %21 = vst.msk [vmem:[#allocation2] sm:$0xff] %vm20, %v19
    %v22 = vld [vmem:[%s0] sm:$0xff]
    %v23 = vld [vmem:[%s2 + $0x1] sm:$0x1]
    %v24 = vld [vmem:[%s2 + $0x4] sm:$0x1]
    %26 = vset.pattern.permute.xlu0 0
    %27 = vperm.xlu0 %26, %v22
    %v28 = vpop.permute.xlu0 %27
    %v30 = vperm.slane %v23, 0
    %v31 = vmul.f32 %v28, %v30
    %v32 = vperm.slane %v24, 0
    %v33 = vadd.f32 %v31, %v32
    %v34 = vmax.f32 %v33, 0.0
    %36 = vrot.lane.b32.xlu0 %v34, 32
    %v37 = vpop.permute.xlu0 %36
    %vm39 = vcmask 523520
    %40 = vst.msk [vmem:[#allocation2] sm:$0xff] %vm39, %v37
    %v41 = vld [vmem:[%s0] sm:$0xff]
    %v42 = vld [vmem:[%s2 + $0x2] sm:$0x1]
    %v43 = vld [vmem:[%s2 + $0x5] sm:$0x1]
    %45 = vset.pattern.permute.xlu0 1
    %46 = vperm.xlu0 %45, %v41
    %v47 = vpop.permute.xlu0 %46
    %v49 = vperm.slane %v42, 0
    %v50 = vmul.f32 %v47, %v49
    %v51 = vperm.slane %v43, 0
    %v52 = vadd.f32 %v50, %v51
    %v53 = vmax.f32 %v52, 0.0
    %55 = vrot.lane.b32.xlu0 %v53, 64
    %v56 = vpop.permute.xlu0 %55
    %vm58 = vcmask 785920
    %59 = vst.msk [vmem:[#allocation2] sm:$0xff] %vm58, %v56
    %v60 = vld [vmem:[%s0] sm:$0xff]
    %v61 = vld [vmem:[%s2 + $0x3] sm:$0x1]
    %v62 = vld [vmem:[%s2 + $0x6] sm:$0x1]
    %64 = vset.pattern.permute.xlu0 2
    %65 = vperm.xlu0 %64, %v60
    %v66 = vpop.permute.xlu0 %65
    %v68 = vperm.slane %v61, 0
    %v69 = vmul.f32 %v66, %v68
    %v70 = vperm.slane %v62, 0
    %v71 = vadd.f32 %v69, %v70
    %v72 = vmax.f32 %v71, 0.0
    %74 = vrot.lane.b32.xlu0 %v72, 96
    %v75 = vpop.permute.xlu0 %74
    %vm77 = vcmask 1048320
    %78 = vst.msk [vmem:[#allocation2] sm:$0xff] %vm77, %v75
    %v79 = vld [vmem:[%s3] sm:$0x7f]
    %v80 = vld [vmem:[%s3 + $0x8] sm:$0x7f]
    %v81 = vld [vmem:[%s1] sm:$0xff]
    %vm82 = vcmp.gt.s32.totalorder %v81, 0
    %v83 = vsel %vm82, %v81, 0
    %vm84 = vcmp.lt.s32.totalorder %v83, 6
    %v85 = vsel %vm84, %v83, 6
    %vm86 = vcmp.eq.s32.totalorder %v85, 0
    %v87 = vsel %vm86, 1, 0
    %88 = vset.pattern.permute.xlu0 0
    %89 = vperm.xlu0 %88, %v87
    %v90 = vpop.permute.xlu0 %89
    %vm91 = vcmp.eq.s32.totalorder %v90, 1
    %v92 = vperm.slane %v79, 0
    %v93 = vsel %vm91, %v92, 0.0
    %vm94 = vcmp.eq.s32.totalorder %v85, 1
    %v95 = vsel %vm94, 1, 0
    %96 = vset.pattern.permute.xlu0 0
    %97 = vperm.xlu0 %96, %v95
    %v98 = vpop.permute.xlu0 %97
    %vm99 = vcmp.eq.s32.totalorder %v98, 1
    %v100 = vperm.slane %v79, 1
    %v101 = vsel %vm99, %v100, 0.0
    %v102 = vadd.f32 %v93, %v101
    %vm103 = vcmp.eq.s32.totalorder %v85, 2
    %v104 = vsel %vm103, 1, 0
    %105 = vset.pattern.permute.xlu0 0
    %106 = vperm.xlu0 %105, %v104
    %v107 = vpop.permute.xlu0 %106
    %vm108 = vcmp.eq.s32.totalorder %v107, 1
    %v109 = vperm.slane %v79, 2
    %v110 = vsel %vm108, %v109, 0.0
    %v111 = vadd.f32 %v102, %v110
    %vm112 = vcmp.eq.s32.totalorder %v85, 3
    %v113 = vsel %vm112, 1, 0
    %114 = vset.pattern.permute.xlu0 0
    %115 = vperm.xlu0 %114, %v113
    %v116 = vpop.permute.xlu0 %115
    %vm117 = vcmp.eq.s32.totalorder %v116, 1
    %v118 = vperm.slane %v79, 3
    %v119 = vsel %vm117, %v118, 0.0
    %v120 = vadd.f32 %v111, %v119
    %vm121 = vcmp.eq.s32.totalorder %v85, 4
    %v122 = vsel %vm121, 1, 0
    %123 = vset.pattern.permute.xlu0 0
    %124 = vperm.xlu0 %123, %v122
    %v125 = vpop.permute.xlu0 %124
    %vm126 = vcmp.eq.s32.totalorder %v125, 1
    %v127 = vperm.slane %v79, 4
    %v128 = vsel %vm126, %v127, 0.0
    %v129 = vadd.f32 %v120, %v128
    %vm130 = vcmp.eq.s32.totalorder %v85, 5
    %v131 = vsel %vm130, 1, 0
    %132 = vset.pattern.permute.xlu0 0
    %133 = vperm.xlu0 %132, %v131
    %v134 = vpop.permute.xlu0 %133
    %vm135 = vcmp.eq.s32.totalorder %v134, 1
    %v136 = vperm.slane %v79, 5
    %v137 = vsel %vm135, %v136, 0.0
    %v138 = vadd.f32 %v129, %v137
    %vm139 = vcmp.eq.s32.totalorder %v85, 6
    %v140 = vsel %vm139, 1, 0
    %141 = vset.pattern.permute.xlu0 0
    %142 = vperm.xlu0 %141, %v140
    %v143 = vpop.permute.xlu0 %142
    %vm144 = vcmp.eq.s32.totalorder %v143, 1
    %v145 = vperm.slane %v79, 6
    %v146 = vsel %vm144, %v145, 0.0
    %v147 = vadd.f32 %v138, %v146
    %148 = vst.msk [vmem:[#allocation2 + $0x8] sm:$0xff] %vm20, %v147
    %v149 = vld [vmem:[%s1] sm:$0xff]
    %vm150 = vcmp.gt.s32.totalorder %v149, 0
    %v151 = vsel %vm150, %v149, 0
    %vm152 = vcmp.lt.s32.totalorder %v151, 6
    %v153 = vsel %vm152, %v151, 6
    %vm154 = vcmp.eq.s32.totalorder %v153, 0
    %v155 = vsel %vm154, 1, 0
    %156 = vset.pattern.permute.xlu0 1
    %157 = vperm.xlu0 %156, %v155
    %v158 = vpop.permute.xlu0 %157
    %vm159 = vcmp.eq.s32.totalorder %v158, 1
    %v160 = vperm.slane %v80, 0
    %v161 = vsel %vm159, %v160, 0.0
    %vm162 = vcmp.eq.s32.totalorder %v153, 1
    %v163 = vsel %vm162, 1, 0
    %164 = vset.pattern.permute.xlu0 1
    %165 = vperm.xlu0 %164, %v163
    %v166 = vpop.permute.xlu0 %165
    %vm167 = vcmp.eq.s32.totalorder %v166, 1
    %v168 = vperm.slane %v80, 1
    %v169 = vsel %vm167, %v168, 0.0
    %v170 = vadd.f32 %v161, %v169
    %vm171 = vcmp.eq.s32.totalorder %v153, 2
    %v172 = vsel %vm171, 1, 0
    %173 = vset.pattern.permute.xlu0 1
    %174 = vperm.xlu0 %173, %v172
    %v175 = vpop.permute.xlu0 %174
    %vm176 = vcmp.eq.s32.totalorder %v175, 1
    %v177 = vperm.slane %v80, 2
    %v178 = vsel %vm176, %v177, 0.0
    %v179 = vadd.f32 %v170, %v178
    %vm180 = vcmp.eq.s32.totalorder %v153, 3
    %v181 = vsel %vm180, 1, 0
    %182 = vset.pattern.permute.xlu0 1
    %183 = vperm.xlu0 %182, %v181
    %v184 = vpop.permute.xlu0 %183
    %vm185 = vcmp.eq.s32.totalorder %v184, 1
    %v186 = vperm.slane %v80, 3
    %v187 = vsel %vm185, %v186, 0.0
    %v188 = vadd.f32 %v179, %v187
    %vm189 = vcmp.eq.s32.totalorder %v153, 4
    %v190 = vsel %vm189, 1, 0
    %191 = vset.pattern.permute.xlu0 1
    %192 = vperm.xlu0 %191, %v190
    %v193 = vpop.permute.xlu0 %192
    %vm194 = vcmp.eq.s32.totalorder %v193, 1
    %v195 = vperm.slane %v80, 4
    %v196 = vsel %vm194, %v195, 0.0
    %v197 = vadd.f32 %v188, %v196
    %vm198 = vcmp.eq.s32.totalorder %v153, 5
    %v199 = vsel %vm198, 1, 0
    %200 = vset.pattern.permute.xlu0 1
    %201 = vperm.xlu0 %200, %v199
    %v202 = vpop.permute.xlu0 %201
    %vm203 = vcmp.eq.s32.totalorder %v202, 1
    %v204 = vperm.slane %v80, 5
    %v205 = vsel %vm203, %v204, 0.0
    %v206 = vadd.f32 %v197, %v205
    %vm207 = vcmp.eq.s32.totalorder %v153, 6
    %v208 = vsel %vm207, 1, 0
    %209 = vset.pattern.permute.xlu0 1
    %210 = vperm.xlu0 %209, %v208
    %v211 = vpop.permute.xlu0 %210
    %vm212 = vcmp.eq.s32.totalorder %v211, 1
    %v213 = vperm.slane %v80, 6
    %v214 = vsel %vm212, %v213, 0.0
    %v215 = vadd.f32 %v206, %v214
    %217 = vrot.lane.b32.xlu0 %v215, 32
    %v218 = vpop.permute.xlu0 %217
    %220 = vst.msk [vmem:[#allocation2 + $0x8] sm:$0xff] %vm39, %v218
    // Predicated region
    $region18: #{tpu_custom_call.1} parent=1 // pred_check
      _
    $region19: #{tpu_custom_call.1} parent=1 // pred_check_branch
      %222 = sbr.rel (0) target = $region21
    $region20: #{tpu_custom_call.1} parent=1 // pred_region
      %224 = vsyncadd [#allocation3], 0
      %s226 = sshll.u32 [#allocation2], 4
      %s227 = int_to_ptr.vmem [resolvable:$true] %s226
      %s228 = sshll.u32 %s4, 4
      %s229 = int_to_ptr.hbm [resolvable:$true] %s228
      %231 = dma.vmem_to_hbm [thread:$0]  %s227, 256, %s229, [#allocation3]
    $region21: #{tpu_custom_call.1} parent=1 // pred_fallthru
      _
    // Predicated region
    $region22: #{tpu_custom_call.1} parent=1 // pred_check
      _
    $region23: #{tpu_custom_call.1} parent=1 // pred_check_branch
      %233 = sbr.rel (0) target = $region25
    $region24: #{tpu_custom_call.1} parent=1 // pred_region
      %235 = dma.done [#allocation3], 256
    $region25: #{tpu_custom_call.1} parent=1 // pred_fallthru
      _
    %236 = vsyncpa [#allocation3], 1

</llo_original>
